<compile_context>
chip_gen: v5e
topology: v5e:2x2
jax: 0.10.0
libtpu: 0.0.40
codegen_flags: <defaults>
</compile_context>

<pallas_src>
import math

import numpy as np
import jax
import jax.numpy as jnp
from jax import lax
from jax.experimental import pallas as pl
from jax.experimental.pallas import tpu as pltpu


def _attention_kernel(x_ref, wq_ref, wk_ref, wv_ref, mask_ref, o_ref):
    # x_ref:    (B*T, E)        flattened activations
    # wq_ref:   (A, E)          query weight, pre-scaled by 1/sqrt(A)
    # wk_ref:   (A, E)          key weight
    # wv_ref:   (A, E)          value weight
    # mask_ref: (B*T, B*T) f32  additive mask: 0 where (same batch AND causal), -inf else
    # o_ref:    (B*T, A)        output slab
    x = x_ref[...]

    # Contract over E; the nn.Linear transpose is folded into the contraction dims.
    dims_contract_last = (((1,), (1,)), ((), ()))
    q = lax.dot_general(x, wq_ref[...], dims_contract_last,
                        preferred_element_type=jnp.float32)          # (B*T, A), pre-scaled
    k = lax.dot_general(x, wk_ref[...], dims_contract_last,
                        preferred_element_type=jnp.float32)          # (B*T, A)
    v = lax.dot_general(x, wv_ref[...], dims_contract_last,
                        preferred_element_type=jnp.float32)          # (B*T, A)

    # scores = Q @ K^T as ONE 2-D MXU matmul over the collapsed batch; block-diagonal
    # causal mask applied with a single VPU add (mask is a precomputed constant tile).
    scores = lax.dot_general(q, k, dims_contract_last,
                             preferred_element_type=jnp.float32)      # (B*T, B*T)
    scores = scores + mask_ref[...]

    # Softmax along keys.  Diagonal is always unmasked, so max is finite and exp(-inf)=0.
    m = jnp.max(scores, axis=-1, keepdims=True)
    e = jnp.exp(scores - m)
    denom = jnp.sum(e, axis=-1, keepdims=True)
    # Exact divide: round(out*1e4)/1e4 epilogue leaves no headroom for approx reciprocal.
    p = e / denom

    out = jnp.dot(p, v, preferred_element_type=jnp.float32)           # (B*T, A)

    # match torch.round(output * 10000) / 10000.0 -- single fused epilogue store.
    o_ref[...] = jnp.round(out * 10000.0) / 10000.0


def prepare_weights(w_q, w_k, w_v):
    """One-time weight prep outside the hot per-call path: fold 1/sqrt(A) into Wq."""
    A = w_q.shape[0]
    return w_q * jnp.float32(1.0 / math.sqrt(A)), w_k, w_v


@jax.jit
def single_head_attention(embedded, w_q_scaled, w_k, w_v):
    """embedded: (B, T, E) f32; weights: (A, E) f32 in PyTorch (out, in) layout.
    w_q_scaled must already carry the 1/sqrt(A) softmax scale (see prepare_weights)."""
    B, T, E = embedded.shape
    A = w_q_scaled.shape[0]
    BT = B * T

    x2 = embedded.reshape(BT, E)                                       # free bitcast

    # Block-diagonal causal mask, built in numpy -> constant-folded at compile time.
    r = np.arange(BT)
    same_batch = (r[:, None] // T) == (r[None, :] // T)
    causal = r[None, :] <= r[:, None]
    mask_np = np.where(same_batch & causal, 0.0, -np.inf).astype(np.float32)
    mask = jnp.asarray(mask_np)                                        # (BT, BT)

    out_flat = pl.pallas_call(
        _attention_kernel,
        out_shape=jax.ShapeDtypeStruct((BT, A), jnp.float32),
        in_specs=[
            pl.BlockSpec(memory_space=pltpu.MemorySpace.VMEM),   # x (B*T, E)
            pl.BlockSpec(memory_space=pltpu.MemorySpace.VMEM),   # w_q (pre-scaled)
            pl.BlockSpec(memory_space=pltpu.MemorySpace.VMEM),   # w_k
            pl.BlockSpec(memory_space=pltpu.MemorySpace.VMEM),   # w_v
            pl.BlockSpec(memory_space=pltpu.MemorySpace.VMEM),   # additive mask
        ],
        out_specs=pl.BlockSpec(memory_space=pltpu.MemorySpace.VMEM),
    )(x2, w_q_scaled, w_k, w_v, mask)

    return out_flat.reshape(B, T, A)                                   # free reshape


def _reference(embedded, w_q, w_k, w_v):
    # pure-JAX reference matching the PyTorch module (unscaled weights)
    K = embedded @ w_k.T
    Q = embedded @ w_q.T
    V = embedded @ w_v.T
    scores = (Q @ jnp.swapaxes(K, 1, 2)) / math.sqrt(Q.shape[-1])
    T = scores.shape[1]
    mask = jnp.tril(jnp.ones((T, T), dtype=bool))
    scores = jnp.where(mask, scores, -jnp.inf)
    w = jax.nn.softmax(scores, axis=-1)
    out = w @ V
    return jnp.round(out * 10000.0) / 10000.0


if __name__ == "__main__":
    # module config: embedding_dim=32, attention_dim=16; input (B=2, T=8, E=32)
    B, T, E, A = 2, 8, 32, 16

    key = jax.random.PRNGKey(0)
    kx, kq, kk, kv = jax.random.split(key, 4)

    embedded = jax.random.normal(kx, (B, T, E), dtype=jnp.float32)

    # deterministic weight init, mimicking nn.Linear's U(-1/sqrt(in), 1/sqrt(in))
    bound = 1.0 / math.sqrt(E)
    w_q = jax.random.uniform(kq, (A, E), minval=-bound, maxval=bound, dtype=jnp.float32)
    w_k = jax.random.uniform(kk, (A, E), minval=-bound, maxval=bound, dtype=jnp.float32)
    w_v = jax.random.uniform(kv, (A, E), minval=-bound, maxval=bound, dtype=jnp.float32)

    # one-time weight prep (softmax scale folded into Wq), outside the per-call path
    w_q_s, w_k_p, w_v_p = prepare_weights(w_q, w_k, w_v)

    out = single_head_attention(embedded, w_q_s, w_k_p, w_v_p)
    out = jax.block_until_ready(out)

    ref = _reference(embedded, w_q, w_k, w_v)
    assert out.shape == (B, T, A)
    assert jnp.allclose(out, ref, atol=1e-4), "mismatch vs reference"

    print("KERNEL_OK")
</pallas_src>

<mosaic_0001>
module attributes {stable_mosaic.version = 11 : i64} {
  func.func @_attention_kernel(%arg0: memref<16x32xf32, #tpu.memory_space<vmem>>, %arg1: memref<16x32xf32, #tpu.memory_space<vmem>>, %arg2: memref<16x32xf32, #tpu.memory_space<vmem>>, %arg3: memref<16x32xf32, #tpu.memory_space<vmem>>, %arg4: memref<16x16xf32, #tpu.memory_space<vmem>>, %arg5: memref<16x16xf32, #tpu.memory_space<vmem>>) attributes {dimension_semantics = [], scalar_prefetch = 0 : i64, scratch_operands = 0 : i64, tpu.core_type = #tpu.core_type<tc>} {
    %c0 = arith.constant 0 : index
    %c0_0 = arith.constant 0 : index
    %0 = vector.load %arg0[%c0, %c0_0] : memref<16x32xf32, #tpu.memory_space<vmem>>, vector<16x32xf32>
    %c0_1 = arith.constant 0 : index
    %c0_2 = arith.constant 0 : index
    %1 = vector.load %arg1[%c0_1, %c0_2] : memref<16x32xf32, #tpu.memory_space<vmem>>, vector<16x32xf32>
    %cst = arith.constant dense<0.000000e+00> : vector<16x16xf32>
    %2 = tpu.matmul %0, %1, %cst {dimension_numbers = #tpu.dot_dimension_numbers<[1], [1], [0], [0], [0, 0, 1, 0], [], []>} : vector<16x32xf32>, vector<16x32xf32>, vector<16x16xf32> -> vector<16x16xf32>
    %c0_3 = arith.constant 0 : index
    %c0_4 = arith.constant 0 : index
    %3 = vector.load %arg2[%c0_3, %c0_4] : memref<16x32xf32, #tpu.memory_space<vmem>>, vector<16x32xf32>
    %cst_5 = arith.constant dense<0.000000e+00> : vector<16x16xf32>
    %4 = tpu.matmul %0, %3, %cst_5 {dimension_numbers = #tpu.dot_dimension_numbers<[1], [1], [0], [0], [0, 0, 1, 0], [], []>} : vector<16x32xf32>, vector<16x32xf32>, vector<16x16xf32> -> vector<16x16xf32>
    %c0_6 = arith.constant 0 : index
    %c0_7 = arith.constant 0 : index
    %5 = vector.load %arg3[%c0_6, %c0_7] : memref<16x32xf32, #tpu.memory_space<vmem>>, vector<16x32xf32>
    %cst_8 = arith.constant dense<0.000000e+00> : vector<16x16xf32>
    %6 = tpu.matmul %0, %5, %cst_8 {dimension_numbers = #tpu.dot_dimension_numbers<[1], [1], [0], [0], [0, 0, 1, 0], [], []>} : vector<16x32xf32>, vector<16x32xf32>, vector<16x16xf32> -> vector<16x16xf32>
    %cst_9 = arith.constant dense<0.000000e+00> : vector<16x16xf32>
    %7 = tpu.matmul %2, %4, %cst_9 {dimension_numbers = #tpu.dot_dimension_numbers<[1], [1], [0], [0], [0, 0, 1, 0], [], []>} : vector<16x16xf32>, vector<16x16xf32>, vector<16x16xf32> -> vector<16x16xf32>
    %c0_10 = arith.constant 0 : index
    %c0_11 = arith.constant 0 : index
    %8 = vector.load %arg4[%c0_10, %c0_11] : memref<16x16xf32, #tpu.memory_space<vmem>>, vector<16x16xf32>
    %9 = arith.addf %7, %8 : vector<16x16xf32>
    %cst_12 = arith.constant dense<0xFF800000> : vector<16xf32>
    %10 = vector.multi_reduction <maximumf>, %9, %cst_12 [1] : vector<16x16xf32> to vector<16xf32>
    %11 = vector.shape_cast %10 : vector<16xf32> to vector<16x1xf32>
    %12 = vector.broadcast %11 : vector<16x1xf32> to vector<16x16xf32>
    %13 = arith.subf %9, %12 : vector<16x16xf32>
    %14 = math.exp %13 : vector<16x16xf32>
    %cst_13 = arith.constant dense<0.000000e+00> : vector<16xf32>
    %15 = vector.multi_reduction <add>, %14, %cst_13 [1] : vector<16x16xf32> to vector<16xf32>
    %16 = vector.shape_cast %15 : vector<16xf32> to vector<16x1xf32>
    %17 = vector.broadcast %16 : vector<16x1xf32> to vector<16x16xf32>
    %18 = arith.divf %14, %17 : vector<16x16xf32>
    %cst_14 = arith.constant dense<0.000000e+00> : vector<16x16xf32>
    %19 = tpu.matmul %18, %6, %cst_14 {dimension_numbers = #tpu.dot_dimension_numbers<[1], [0], [0], [1], [0, 0, 1, 1], [], []>} : vector<16x16xf32>, vector<16x16xf32>, vector<16x16xf32> -> vector<16x16xf32>
    %cst_15 = arith.constant 1.000000e+04 : f32
    %20 = vector.broadcast %cst_15 : f32 to vector<16x16xf32>
    %21 = arith.mulf %19, %20 : vector<16x16xf32>
    %22 = math.roundeven %21 : vector<16x16xf32>
    %cst_16 = arith.constant 1.000000e+04 : f32
    %23 = vector.broadcast %cst_16 : f32 to vector<16x16xf32>
    %24 = arith.divf %22, %23 : vector<16x16xf32>
    %c0_17 = arith.constant 0 : index
    %c0_18 = arith.constant 0 : index
    %25 = vector.load %arg5[%c0_17, %c0_18] : memref<16x16xf32, #tpu.memory_space<vmem>>, vector<16x16xf32>
    tpu.vector_store %arg5[%c0_17, %c0_18], %24 {strides = array<i32>} : memref<16x16xf32, #tpu.memory_space<vmem>>, vector<16x16xf32>,
    return
  }
}

</mosaic_0001>

<llo_original>
// kernel: single_head_attention.1
$region0: #{single_head_attention.1}
  #allocation0 [shape = 'u32[]', space=smem, size = 0x4, offset = 0x4, fixed_abs, tag = 'smem constant byte address 0x4 - core index']
  #allocation1 [shape = 'u32[72,128]{1,0:T(1,128)}', space=vmem, size = 0x9000, scoped, tag = 'internal scratch']
  %s0 = inlined_call_operand.hbm [shape: f32[16,32], index: 0, kind: input, shape index: {}]
  %s1 = inlined_call_operand.hbm [shape: f32[16,32], index: 1, kind: input, shape index: {}]
  %s2 = inlined_call_operand.hbm [shape: f32[16,32], index: 2, kind: input, shape index: {}]
  %s3 = inlined_call_operand.hbm [shape: f32[16,32], index: 3, kind: input, shape index: {}]
  %s4 = inlined_call_operand.hbm [shape: f32[16,16], index: 4, kind: input, shape index: {}]
  %s5 = inlined_call_operand.hbm [shape: f32[16,16], index: 5, kind: output, shape index: {}]
  %s6 = sld [smem:[#allocation0]]
  $region50: #{single_head_attention.1} parent=0
    _
  %s8 = ssub.s32 1, %s6
  %s9 = scalar_select 0, %s8, %s6
  $region1: #{single_head_attention.1} parent=0
    #allocation2 [shape = 'u8[8192]{0}', space=vmem, size = 0x2000, scoped, tag = 'input window, operand 0, single buffered']
    #allocation3 [shape = 's32[1]{0}', space=sflag, size = 0x4, scoped, tag = 'scoped memory for single_head_attention.1']
    #allocation4 [shape = 's32[1]{0}', space=sflag, size = 0x4, scoped, tag = 'scoped memory for single_head_attention.1']
    #allocation5 [shape = 'u8[8192]{0}', space=vmem, size = 0x2000, scoped, tag = 'input window, operand 1, single buffered']
    #allocation6 [shape = 's32[1]{0}', space=sflag, size = 0x4, scoped, tag = 'scoped memory for single_head_attention.1']
    #allocation7 [shape = 'u8[8192]{0}', space=vmem, size = 0x2000, scoped, tag = 'input window, operand 2, single buffered']
    #allocation8 [shape = 'u8[8192]{0}', space=vmem, size = 0x2000, scoped, tag = 'input window, operand 3, single buffered']
    #allocation9 [shape = 's32[1]{0}', space=sflag, size = 0x4, scoped, tag = 'scoped memory for single_head_attention.1']
    #allocation10 [shape = 'u8[8192]{0}', space=vmem, size = 0x2000, scoped, tag = 'input window, operand 4, single buffered']
    #allocation11 [shape = 'u8[8192]{0}', space=vmem, size = 0x2000, scoped, tag = 'output window, operand 0, single buffered']
    %10 = vsyncpa [#allocation3], 0
    %11 = vsyncpa [#allocation6], 0
    %12 = vsyncpa [#allocation9], 0
    %13 = vsyncpa [#allocation4], 0
    // Predicated region
    $region2: #{single_head_attention.1} parent=1 // pred_check
      _
    $region3: #{single_head_attention.1} parent=1 // pred_check_branch
      %15 = sbr.rel (0) target = $region5
    $region4: #{single_head_attention.1} parent=1 // pred_region
      %17 = vsyncadd [#allocation3], 0
      %s18 = sshll.u32 %s0, 4
      %s19 = int_to_ptr.hbm [resolvable:$true] %s18
      %s20 = sshll.u32 [#allocation2], 4
      %s21 = int_to_ptr.vmem [resolvable:$true] %s20
      %26 = dma.hbm_to_vmem [thread:$0]  %s19, 256, %s21, [#allocation3], 128, 128, 8
    $region5: #{single_head_attention.1} parent=1 // pred_fallthru
      _
    // Predicated region
    $region6: #{single_head_attention.1} parent=1 // pred_check
      _
    $region7: #{single_head_attention.1} parent=1 // pred_check_branch
      %28 = sbr.rel (0) target = $region9
    $region8: #{single_head_attention.1} parent=1 // pred_region
      %30 = vsyncadd [#allocation6], 0
      %s31 = sshll.u32 %s1, 4
      %s32 = int_to_ptr.hbm [resolvable:$true] %s31
      %s33 = sshll.u32 [#allocation5], 4
      %s34 = int_to_ptr.vmem [resolvable:$true] %s33
      %39 = dma.hbm_to_vmem [thread:$0]  %s32, 256, %s34, [#allocation6], 128, 128, 8
    $region9: #{single_head_attention.1} parent=1 // pred_fallthru
      _
    // Predicated region
    $region10: #{single_head_attention.1} parent=1 // pred_check
      _
    $region11: #{single_head_attention.1} parent=1 // pred_check_branch
      %41 = sbr.rel (0) target = $region13
    $region12: #{single_head_attention.1} parent=1 // pred_region
      %43 = vsyncadd [#allocation6], 0
      %s44 = sshll.u32 %s2, 4
      %s45 = int_to_ptr.hbm [resolvable:$true] %s44
      %s46 = sshll.u32 [#allocation7], 4
      %s47 = int_to_ptr.vmem [resolvable:$true] %s46
      %52 = dma.hbm_to_vmem [thread:$0]  %s45, 256, %s47, [#allocation6], 128, 128, 8
    $region13: #{single_head_attention.1} parent=1 // pred_fallthru
      _
    // Predicated region
    $region14: #{single_head_attention.1} parent=1 // pred_check
      _
    $region15: #{single_head_attention.1} parent=1 // pred_check_branch
      %54 = sbr.rel (0) target = $region17
    $region16: #{single_head_attention.1} parent=1 // pred_region
      %56 = vsyncadd [#allocation9], 0
      %s57 = sshll.u32 %s3, 4
      %s58 = int_to_ptr.hbm [resolvable:$true] %s57
      %s59 = sshll.u32 [#allocation8], 4
      %s60 = int_to_ptr.vmem [resolvable:$true] %s59
      %65 = dma.hbm_to_vmem [thread:$0]  %s58, 256, %s60, [#allocation9], 128, 128, 8
    $region17: #{single_head_attention.1} parent=1 // pred_fallthru
      _
    // Predicated region
    $region18: #{single_head_attention.1} parent=1 // pred_check
      _
    $region19: #{single_head_attention.1} parent=1 // pred_check_branch
      %67 = sbr.rel (0) target = $region21
    $region20: #{single_head_attention.1} parent=1 // pred_region
      %69 = vsyncadd [#allocation9], 0
      %s70 = sshll.u32 %s4, 4
      %s71 = int_to_ptr.hbm [resolvable:$true] %s70
      %s72 = sshll.u32 [#allocation10], 4
      %s73 = int_to_ptr.vmem [resolvable:$true] %s72
      %78 = dma.hbm_to_vmem [thread:$0]  %s71, 256, %s73, [#allocation9], 128, 128, 8
    $region21: #{single_head_attention.1} parent=1 // pred_fallthru
      _
    // Predicated region
    $region22: #{single_head_attention.1} parent=1 // pred_check
      _
    $region23: #{single_head_attention.1} parent=1 // pred_check_branch
      %80 = sbr.rel (0) target = $region25
    $region24: #{single_head_attention.1} parent=1 // pred_region
      %82 = dma.done [#allocation3], 256
    $region25: #{single_head_attention.1} parent=1 // pred_fallthru
      _
    // Predicated region
    $region26: #{single_head_attention.1} parent=1 // pred_check
      _
    $region27: #{single_head_attention.1} parent=1 // pred_check_branch
      %84 = sbr.rel (0) target = $region29
    $region28: #{single_head_attention.1} parent=1 // pred_region
      %86 = dma.done [#allocation6], 256
    $region29: #{single_head_attention.1} parent=1 // pred_fallthru
      _
    // Predicated region
    $region30: #{single_head_attention.1} parent=1 // pred_check
      _
    $region31: #{single_head_attention.1} parent=1 // pred_check_branch
      %88 = sbr.rel (0) target = $region33
    $region32: #{single_head_attention.1} parent=1 // pred_region
      %90 = dma.done [#allocation6], 256
    $region33: #{single_head_attention.1} parent=1 // pred_fallthru
      _
    // Predicated region
    $region34: #{single_head_attention.1} parent=1 // pred_check
      _
    $region35: #{single_head_attention.1} parent=1 // pred_check_branch
      %92 = sbr.rel (0) target = $region37
    $region36: #{single_head_attention.1} parent=1 // pred_region
      %94 = dma.done [#allocation9], 256
    $region37: #{single_head_attention.1} parent=1 // pred_fallthru
      _
    // Predicated region
    $region38: #{single_head_attention.1} parent=1 // pred_check
      _
    $region39: #{single_head_attention.1} parent=1 // pred_check_branch
      %96 = sbr.rel (0) target = $region41
    $region40: #{single_head_attention.1} parent=1 // pred_region
      %98 = dma.done [#allocation9], 256
    $region41: #{single_head_attention.1} parent=1 // pred_fallthru
      _
    %v99 = vld [vmem:[#allocation2] sm:$0xff]
    %v100 = vld [vmem:[#allocation2 + $0x8] sm:$0xff]
    %v101 = vld [vmem:[#allocation5] sm:$0xff]
    %v102 = vld [vmem:[#allocation5 + $0x8] sm:$0xff]
    %vm103 = vcmask 261120
    %v105 = vsel %vm103, %v99, 0
    %v108 = vsel %vm103, %v100, 0
    %v111 = vsel %vm103, %v101, 0
    %v114 = vsel %vm103, %v102, 0
    %116 = vmatpush.xpose.msra.mxu0 0.0
    %117 = vmatpush.xpose.msra.mxu0 0.0
    %118 = vmatpush.xpose.msra.mxu0 0.0
    %119 = vmatpush.xpose.msra.mxu0 0.0
    %120 = vmatpush.xpose.msra.mxu0 0.0
    %121 = vmatpush.xpose.msra.mxu0 0.0
    %122 = vmatpush.xpose.msra.mxu0 0.0
    %123 = vmatpush.xpose.msra.mxu0 0.0
    %124 = vmatpush.xpose.msra.mxu0 0.0
    %125 = vmatpush.xpose.msra.mxu0 0.0
    %126 = vmatpush.xpose.msra.mxu0 0.0
    %127 = vmatpush.xpose.msra.mxu0 0.0
    %128 = vmatpush.xpose.msra.mxu0 0.0
    %129 = vmatpush.xpose.msra.mxu0 0.0
    %130 = vmatpush.xpose.msra.mxu0 %v114
    %131 = vmatpush.xpose.msra.mxu0 %v111
    %132 = vmatmul.f32.gmra.mxu0 %v105
    %v133 = vpop.f32.mrf.mxu0
    %v134 = vadd.f32 0.0, %v133
    %135 = vmatmul.f32.gmra.mxu0 %v108
    %v136 = vpop.f32.mrf.mxu0
    %v137 = vadd.f32 0.0, %v136
    %138 = vdwg.mxu0
    %v139 = vld [vmem:[#allocation7] sm:$0xff]
    %v140 = vld [vmem:[#allocation7 + $0x8] sm:$0xff]
    %v142 = vsel %vm103, %v139, 0
    %v145 = vsel %vm103, %v140, 0
    %147 = vmatpush.xpose.msra.mxu0 0.0
    %148 = vmatpush.xpose.msra.mxu0 0.0
    %149 = vmatpush.xpose.msra.mxu0 0.0
    %150 = vmatpush.xpose.msra.mxu0 0.0
    %151 = vmatpush.xpose.msra.mxu0 0.0
    %152 = vmatpush.xpose.msra.mxu0 0.0
    %153 = vmatpush.xpose.msra.mxu0 0.0
    %154 = vmatpush.xpose.msra.mxu0 0.0
    %155 = vmatpush.xpose.msra.mxu0 0.0
    %156 = vmatpush.xpose.msra.mxu0 0.0
    %157 = vmatpush.xpose.msra.mxu0 0.0
    %158 = vmatpush.xpose.msra.mxu0 0.0
    %159 = vmatpush.xpose.msra.mxu0 0.0
    %160 = vmatpush.xpose.msra.mxu0 0.0
    %161 = vmatpush.xpose.msra.mxu0 %v145
    %162 = vmatpush.xpose.msra.mxu0 %v142
    %163 = vmatmul.f32.gmra.mxu0 %v105
    %v164 = vpop.f32.mrf.mxu0
    %v165 = vadd.f32 0.0, %v164
    %166 = vmatmul.f32.gmra.mxu0 %v108
    %v167 = vpop.f32.mrf.mxu0
    %v168 = vadd.f32 0.0, %v167
    %169 = vdwg.mxu0
    %v170 = vld [vmem:[#allocation8] sm:$0xff]
    %v171 = vld [vmem:[#allocation8 + $0x8] sm:$0xff]
    %v173 = vsel %vm103, %v170, 0
    %v176 = vsel %vm103, %v171, 0
    %178 = vmatpush.xpose.msra.mxu0 0.0
    %179 = vmatpush.xpose.msra.mxu0 0.0
    %180 = vmatpush.xpose.msra.mxu0 0.0
    %181 = vmatpush.xpose.msra.mxu0 0.0
    %182 = vmatpush.xpose.msra.mxu0 0.0
    %183 = vmatpush.xpose.msra.mxu0 0.0
    %184 = vmatpush.xpose.msra.mxu0 0.0
    %185 = vmatpush.xpose.msra.mxu0 0.0
    %186 = vmatpush.xpose.msra.mxu0 0.0
    %187 = vmatpush.xpose.msra.mxu0 0.0
    %188 = vmatpush.xpose.msra.mxu0 0.0
    %189 = vmatpush.xpose.msra.mxu0 0.0
    %190 = vmatpush.xpose.msra.mxu0 0.0
    %191 = vmatpush.xpose.msra.mxu0 0.0
    %192 = vmatpush.xpose.msra.mxu0 %v176
    %193 = vmatpush.xpose.msra.mxu0 %v173
    %194 = vmatmul.f32.gmra.mxu0 %v105
    %v195 = vpop.f32.mrf.mxu0
    %v196 = vadd.f32 0.0, %v195
    %197 = vmatmul.f32.gmra.mxu0 %v108
    %v198 = vpop.f32.mrf.mxu0
    %v199 = vadd.f32 0.0, %v198
    %200 = vdwg.mxu0
    %v201 = vld [vmem:[#allocation10] sm:$0xff]
    %v202 = vld [vmem:[#allocation10 + $0x8] sm:$0xff]
    %vm203 = vcmask 130048
    %v205 = vsel %vm203, %v134, 0
    %v208 = vsel %vm203, %v137, 0
    %v211 = vsel %vm203, %v165, 0
    %v214 = vsel %vm203, %v168, 0
    %216 = vmatpush.xpose.msra.mxu0 0.0
    %217 = vmatpush.xpose.msra.mxu0 0.0
    %218 = vmatpush.xpose.msra.mxu0 0.0
    %219 = vmatpush.xpose.msra.mxu0 0.0
    %220 = vmatpush.xpose.msra.mxu0 0.0
    %221 = vmatpush.xpose.msra.mxu0 0.0
    %222 = vmatpush.xpose.msra.mxu0 0.0
    %223 = vmatpush.xpose.msra.mxu0 0.0
    %224 = vmatpush.xpose.msra.mxu0 0.0
    %225 = vmatpush.xpose.msra.mxu0 0.0
    %226 = vmatpush.xpose.msra.mxu0 0.0
    %227 = vmatpush.xpose.msra.mxu0 0.0
    %228 = vmatpush.xpose.msra.mxu0 0.0
    %229 = vmatpush.xpose.msra.mxu0 0.0
    %230 = vmatpush.xpose.msra.mxu0 %v214
    %231 = vmatpush.xpose.msra.mxu0 %v211
    %232 = vmatmul.f32.gmra.mxu0 %v205
    %v233 = vpop.f32.mrf.mxu0
    %v234 = vadd.f32 %v201, %v233
    %235 = vmatmul.f32.gmra.mxu0 %v208
    %v236 = vpop.f32.mrf.mxu0
    %v237 = vadd.f32 %v202, %v236
    %238 = vdwg.mxu0
    %v239 = vsel %vm203, %v234, -inf
    %240 = vmax.xlane.f32.xlu0 %v239
    %v241 = vpop.xlane.xlu0 %240
    %v242 = vsel %vm203, %v237, -inf
    %243 = vmax.xlane.f32.xlu0 %v242
    %v244 = vpop.xlane.xlu0 %243
    %v245 = vsub.f32 %v234, %v241
    %v246 = vsub.f32 %v237, %v244
    %v247 = vmul.f32 %v245, 1.442695
    %v248 = vpow.pop %v247
    %v249 = vmul.f32 %v246, 1.442695
    %v250 = vpow.pop %v249
    %v251 = vsel %vm203, %v248, 0.0
    %252 = vadd.xlane.f32.xlu0 %v251
    %v253 = vpop.xlane.xlu0 %252
    %v254 = vsel %vm203, %v250, 0.0
    %255 = vadd.xlane.f32.xlu0 %v254
    %v256 = vpop.xlane.xlu0 %255
    %v257 = vrcp.pop %v253
    %v258 = vmul.f32 %v253, %v257
    %v259 = vsub.f32 1.0, %v258
    %v260 = vmul.f32 %v257, %v259
    %v261 = vadd.f32 %v257, %v260
    %vm262 = vweird.f32 %v253
    %vm263 = vweird.f32 %v257
    %vm264 = vmor %vm262, %vm263
    %v265 = vsel %vm264, %v257, %v261
    %v266 = vand.u32 2147483647, %v253
    %vm267 = vcmp.eq.f32.partialorder %v266, 8.507059e+37
    %v268 = vand.u32 %v253, 2147483648
    %v269 = vor.u32 1.1754944e-38, %v268
    %v270 = vsel %vm267, %v269, %v265
    %v271 = vmul.f32 %v248, %v270
    %v272 = vrcp.pop %v256
    %v273 = vmul.f32 %v256, %v272
    %v274 = vsub.f32 1.0, %v273
    %v275 = vmul.f32 %v272, %v274
    %v276 = vadd.f32 %v272, %v275
    %vm277 = vweird.f32 %v256
    %vm278 = vweird.f32 %v272
    %vm279 = vmor %vm277, %vm278
    %v280 = vsel %vm279, %v272, %v276
    %v281 = vand.u32 2147483647, %v256
    %vm282 = vcmp.eq.f32.partialorder %v281, 8.507059e+37
    %v283 = vand.u32 %v256, 2147483648
    %v284 = vor.u32 1.1754944e-38, %v283
    %v285 = vsel %vm282, %v284, %v280
    %v286 = vmul.f32 %v250, %v285
    %v288 = vsel %vm203, %v271, 0
    %v291 = vsel %vm203, %v286, 0
    %293 = vmatpush.msra.mxu0 0.0
    %294 = vmatpush.msra.mxu0 0.0
    %295 = vmatpush.msra.mxu0 0.0
    %296 = vmatpush.msra.mxu0 0.0
    %297 = vmatpush.msra.mxu0 0.0
    %298 = vmatpush.msra.mxu0 0.0
    %299 = vmatpush.msra.mxu0 0.0
    %300 = vmatpush.msra.mxu0 0.0
    %301 = vmatpush.msra.mxu0 0.0
    %302 = vmatpush.msra.mxu0 0.0
    %303 = vmatpush.msra.mxu0 0.0
    %304 = vmatpush.msra.mxu0 0.0
    %305 = vmatpush.msra.mxu0 0.0
    %306 = vmatpush.msra.mxu0 0.0
    %307 = vmatpush.msra.mxu0 %v199
    %308 = vmatpush.msra.mxu0 %v196
    %309 = vmatmul.f32.gmra.mxu0 %v288
    %v310 = vpop.f32.mrf.mxu0
    %v311 = vadd.f32 0.0, %v310
    %312 = vmatmul.f32.gmra.mxu0 %v291
    %v313 = vpop.f32.mrf.mxu0
    %v314 = vadd.f32 0.0, %v313
    %315 = vdwg.mxu0
    %v316 = vmul.f32 %v311, 10000.0
    %v317 = vmul.f32 %v314, 10000.0
    %v318 = vround.ne.pseudo %v316
    %v319 = vround.ne.pseudo %v317
    %v320 = vrcp.pop 10000.0
    %v321 = vmul.f32 10000.0, %v320
    %v322 = vsub.f32 1.0, %v321
    %v323 = vmul.f32 %v320, %v322
    %v324 = vadd.f32 %v320, %v323
    %vm325 = vweird.f32 %v320
    %v326 = vsel %vm325, %v320, %v324
    %v327 = vmul.f32 %v318, %v326
    %v328 = vmul.f32 %v319, %v326
    %329 = vst.msk [vmem:[#allocation11] sm:$0xff] %vm203, %v327
    %330 = vst.msk [vmem:[#allocation11 + $0x8] sm:$0xff] %vm203, %v328
    // Predicated region
    $region42: #{single_head_attention.1} parent=1 // pred_check
      _
    $region43: #{single_head_attention.1} parent=1 // pred_check_branch
      %332 = sbr.rel (0) target = $region45
    $region44: #{single_head_attention.1} parent=1 // pred_region
      %334 = vsyncadd [#allocation4], 0
      %s335 = sshll.u32 [#allocation11], 4
      %s336 = int_to_ptr.vmem [resolvable:$true] %s335
      %s337 = sshll.u32 %s5, 4
      %s338 = int_to_ptr.hbm [resolvable:$true] %s337
      %343 = dma.vmem_to_hbm [thread:$0]  %s336, 256, %s338, [#allocation4], 128, 128, 8
    $region45: #{single_head_attention.1} parent=1 // pred_fallthru
      _
    // Predicated region
    $region46: #{single_head_attention.1} parent=1 // pred_check
      _
    $region47: #{single_head_attention.1} parent=1 // pred_check_branch
      %345 = sbr.rel (0) target = $region49
    $region48: #{single_head_attention.1} parent=1 // pred_region
      %347 = dma.done [#allocation4], 256
    $region49: #{single_head_attention.1} parent=1 // pred_fallthru
      _
    %348 = vsyncpa [#allocation3], 1
    %349 = vsyncpa [#allocation6], 1
    %350 = vsyncpa [#allocation9], 1
    %351 = vsyncpa [#allocation4], 1

</llo_original>
